<compile_context>
chip_gen: v5e
topology: v5e:2x2
jax: 0.10.0
libtpu: 0.0.40
codegen_flags: <defaults>
</compile_context>

<pallas_src>
import functools

import jax
import jax.numpy as jnp
import numpy as np
from jax.experimental import pallas as pl
from jax.experimental.pallas import tpu as pltpu

INPUT_SIZE = 28
HIDDEN = 64
OUT_DIM = 10


def _lstm_kernel(x_ref, wih_ref, whh_ref, b_ref, wout_ref, bout_ref,
                 out_ref, gx_ref, *, seq_len, batch_pad):
    """Single-invocation LSTM recurrence + final Linear.

    x_ref    : (T*Bp, I)   time-major flattened inputs (row = t*Bp + b)
    wih_ref  : (I, 4H)     input->gates weight (pre-transposed, gate order i,f,g,o)
    whh_ref  : (H, 4H)     hidden->gates weight (pre-transposed)
    b_ref    : (1, 4H)     combined bias (b_ih + b_hh)
    wout_ref : (H, 10)     final linear weight (pre-transposed)
    bout_ref : (1, 10)     final linear bias
    out_ref  : (Bp, 10)    logits for the padded batch
    gx_ref   : (T*Bp, 4H)  VMEM scratch: hoisted input projection
    """
    # Phase 1: input projection for ALL timesteps in one MXU matmul
    # (independent of h, so it does not belong on the serial critical path).
    gx_ref[...] = (
        jnp.dot(x_ref[...], wih_ref[...], preferred_element_type=jnp.float32)
        + b_ref[...])

    whh = whh_ref[...]
    h = jnp.zeros((batch_pad, HIDDEN), jnp.float32)
    c = jnp.zeros((batch_pad, HIDDEN), jnp.float32)

    # Phase 2: serial recurrence. Only h @ W_hh^T remains per step.
    # Static unroll: T is small (8-32). For long sequences switch to
    # lax.fori_loop with pl.ds indexing into gx_ref.
    for t in range(seq_len):
        gx_t = gx_ref[t * batch_pad:(t + 1) * batch_pad, :]        # (Bp, 4H)
        gates = gx_t + jnp.dot(h, whh, preferred_element_type=jnp.float32)

        # Full-width activations keep the transcendental work on whole vregs
        # (EUP slot); per-gate slices happen on the already-activated values.
        sig = jax.nn.sigmoid(gates)
        tah = jnp.tanh(gates)
        i_g = sig[:, 0 * HIDDEN:1 * HIDDEN]
        f_g = sig[:, 1 * HIDDEN:2 * HIDDEN]
        g_g = tah[:, 2 * HIDDEN:3 * HIDDEN]
        o_g = sig[:, 3 * HIDDEN:4 * HIDDEN]

        c = f_g * c + i_g * g_g
        h = o_g * jnp.tanh(c)

    # Final classifier on the last hidden state (written exactly once).
    out_ref[...] = (jnp.dot(h, wout_ref[...], preferred_element_type=jnp.float32)
                    + bout_ref[...])


def rnn_forward(x, params):
    """x: (B, T, INPUT_SIZE) float32 -> logits (B, 10) float32."""
    B, T, I = x.shape
    assert I == INPUT_SIZE
    Bp = max(8, ((B + 7) // 8) * 8)          # sublane-aligned batch

    # Layout plumbing in the wrapper: time-major, batch padded, flattened so
    # the kernel sees one lane-dense (T*Bp, I) slab and per-step rows are
    # contiguous, 8-sublane-aligned static slices.
    x_tbi = jnp.transpose(x, (1, 0, 2))                          # (T, B, I)
    if Bp != B:
        x_tbi = jnp.pad(x_tbi, ((0, 0), (0, Bp - B), (0, 0)))
    x_flat = x_tbi.reshape(T * Bp, I)                            # (T*Bp, I)

    wih_t = params["w_ih"].T                                     # (I, 4H)
    whh_t = params["w_hh"].T                                     # (H, 4H)
    b = (params["b_ih"] + params["b_hh"]).reshape(1, 4 * HIDDEN) # (1, 4H)
    wout_t = params["w_out"].T                                   # (H, 10)
    bout = params["b_out"].reshape(1, OUT_DIM)                   # (1, 10)

    kernel = functools.partial(_lstm_kernel, seq_len=T, batch_pad=Bp)

    out_pad = pl.pallas_call(
        kernel,
        out_shape=jax.ShapeDtypeStruct((Bp, OUT_DIM), jnp.float32),
        in_specs=[pl.BlockSpec(memory_space=pltpu.MemorySpace.VMEM)] * 6,
        out_specs=pl.BlockSpec(memory_space=pltpu.MemorySpace.VMEM),
        scratch_shapes=[pltpu.VMEM((T * Bp, 4 * HIDDEN), jnp.float32)],
    )(x_flat, wih_t, whh_t, b, wout_t, bout)

    return out_pad[:B]


def init_params(key):
    """Deterministic parameter init matching PyTorch LSTM/Linear shapes."""
    k = jax.random.split(key, 6)
    s_lstm = 1.0 / np.sqrt(HIDDEN)
    s_lin = 1.0 / np.sqrt(HIDDEN)
    return {
        "w_ih": jax.random.uniform(k[0], (4 * HIDDEN, INPUT_SIZE),
                                   jnp.float32, -s_lstm, s_lstm),
        "w_hh": jax.random.uniform(k[1], (4 * HIDDEN, HIDDEN),
                                   jnp.float32, -s_lstm, s_lstm),
        "b_ih": jax.random.uniform(k[2], (4 * HIDDEN,),
                                   jnp.float32, -s_lstm, s_lstm),
        "b_hh": jax.random.uniform(k[3], (4 * HIDDEN,),
                                   jnp.float32, -s_lstm, s_lstm),
        "w_out": jax.random.uniform(k[4], (OUT_DIM, HIDDEN),
                                    jnp.float32, -s_lin, s_lin),
        "b_out": jax.random.uniform(k[5], (OUT_DIM,),
                                    jnp.float32, -s_lin, s_lin),
    }


def reference_forward(x, params):
    """Pure-JAX reference of the PyTorch forward (for verification)."""
    B, T, _ = x.shape
    h = jnp.zeros((B, HIDDEN), jnp.float32)
    c = jnp.zeros((B, HIDDEN), jnp.float32)
    wih_t = params["w_ih"].T
    whh_t = params["w_hh"].T
    b = params["b_ih"] + params["b_hh"]
    for t in range(T):
        gates = x[:, t, :] @ wih_t + h @ whh_t + b
        i_g = jax.nn.sigmoid(gates[:, 0 * HIDDEN:1 * HIDDEN])
        f_g = jax.nn.sigmoid(gates[:, 1 * HIDDEN:2 * HIDDEN])
        g_g = jnp.tanh(gates[:, 2 * HIDDEN:3 * HIDDEN])
        o_g = jax.nn.sigmoid(gates[:, 3 * HIDDEN:4 * HIDDEN])
        c = f_g * c + i_g * g_g
        h = o_g * jnp.tanh(c)
    return h @ params["w_out"].T + params["b_out"]


if __name__ == "__main__":
    key = jax.random.PRNGKey(0)
    kx, kp = jax.random.split(key)

    B, T = 2, 8
    x = jax.random.normal(kx, (B, T, INPUT_SIZE), jnp.float32)
    params = init_params(kp)

    out = rnn_forward(x, params)
    out = jax.block_until_ready(out)

    ref = reference_forward(x, params)
    np.testing.assert_allclose(np.asarray(out), np.asarray(ref),
                               rtol=1e-5, atol=1e-5)

    print("KERNEL_OK")
</pallas_src>

<mosaic_0001>
module attributes {stable_mosaic.version = 11 : i64} {
  func.func @_lstm_kernel(%arg0: memref<64x28xf32, #tpu.memory_space<vmem>>, %arg1: memref<28x256xf32, #tpu.memory_space<vmem>>, %arg2: memref<64x256xf32, #tpu.memory_space<vmem>>, %arg3: memref<1x256xf32, #tpu.memory_space<vmem>>, %arg4: memref<64x10xf32, #tpu.memory_space<vmem>>, %arg5: memref<1x10xf32, #tpu.memory_space<vmem>>, %arg6: memref<8x10xf32, #tpu.memory_space<vmem>>, %arg7: memref<64x256xf32, #tpu.memory_space<vmem>>) attributes {dimension_semantics = [], scalar_prefetch = 0 : i64, scratch_operands = 1 : i64, tpu.core_type = #tpu.core_type<tc>} {
    %c0 = arith.constant 0 : index
    %c0_0 = arith.constant 0 : index
    %0 = vector.load %arg0[%c0, %c0_0] : memref<64x28xf32, #tpu.memory_space<vmem>>, vector<64x28xf32>
    %c0_1 = arith.constant 0 : index
    %c0_2 = arith.constant 0 : index
    %1 = vector.load %arg1[%c0_1, %c0_2] : memref<28x256xf32, #tpu.memory_space<vmem>>, vector<28x256xf32>
    %cst = arith.constant dense<0.000000e+00> : vector<64x256xf32>
    %2 = tpu.matmul %0, %1, %cst {dimension_numbers = #tpu.dot_dimension_numbers<[1], [0], [0], [1], [0, 0, 1, 1], [], []>} : vector<64x28xf32>, vector<28x256xf32>, vector<64x256xf32> -> vector<64x256xf32>
    %c0_3 = arith.constant 0 : index
    %c0_4 = arith.constant 0 : index
    %3 = vector.load %arg3[%c0_3, %c0_4] : memref<1x256xf32, #tpu.memory_space<vmem>>, vector<1x256xf32>
    %4 = vector.broadcast %3 : vector<1x256xf32> to vector<64x256xf32>
    %5 = arith.addf %2, %4 : vector<64x256xf32>
    %c0_5 = arith.constant 0 : index
    %c0_6 = arith.constant 0 : index
    %6 = vector.load %arg7[%c0_5, %c0_6] : memref<64x256xf32, #tpu.memory_space<vmem>>, vector<64x256xf32>
    tpu.vector_store %arg7[%c0_5, %c0_6], %5 {strides = array<i32>} : memref<64x256xf32, #tpu.memory_space<vmem>>, vector<64x256xf32>,
    %c0_7 = arith.constant 0 : index
    %c0_8 = arith.constant 0 : index
    %7 = vector.load %arg2[%c0_7, %c0_8] : memref<64x256xf32, #tpu.memory_space<vmem>>, vector<64x256xf32>
    %cst_9 = arith.constant 0.000000e+00 : f32
    %8 = vector.broadcast %cst_9 : f32 to vector<8x64xf32>
    %cst_10 = arith.constant 0.000000e+00 : f32
    %9 = vector.broadcast %cst_10 : f32 to vector<8x64xf32>
    %c0_11 = arith.constant 0 : index
    %c0_12 = arith.constant 0 : index
    %10 = vector.load %arg7[%c0_11, %c0_12] : memref<64x256xf32, #tpu.memory_space<vmem>>, vector<8x256xf32>
    %cst_13 = arith.constant dense<0.000000e+00> : vector<8x256xf32>
    %11 = tpu.matmul %8, %7, %cst_13 {dimension_numbers = #tpu.dot_dimension_numbers<[1], [0], [0], [1], [0, 0, 1, 1], [], []>} : vector<8x64xf32>, vector<64x256xf32>, vector<8x256xf32> -> vector<8x256xf32>
    %12 = arith.addf %10, %11 : vector<8x256xf32>
    %13 = arith.negf %12 : vector<8x256xf32>
    %14 = math.exp %13 : vector<8x256xf32>
    %cst_14 = arith.constant 1.000000e+00 : f32
    %15 = vector.broadcast %cst_14 : f32 to vector<8x256xf32>
    %16 = arith.addf %15, %14 : vector<8x256xf32>
    %17 = arith.divf %15, %16 : vector<8x256xf32>
    %18 = math.tanh %12 : vector<8x256xf32>
    %19 = vector.extract_strided_slice %17 {offsets = [0, 0], sizes = [8, 64], strides = [1, 1]} : vector<8x256xf32> to vector<8x64xf32>
    %20 = vector.extract_strided_slice %17 {offsets = [0, 64], sizes = [8, 64], strides = [1, 1]} : vector<8x256xf32> to vector<8x64xf32>
    %21 = vector.extract_strided_slice %18 {offsets = [0, 128], sizes = [8, 64], strides = [1, 1]} : vector<8x256xf32> to vector<8x64xf32>
    %22 = vector.extract_strided_slice %17 {offsets = [0, 192], sizes = [8, 64], strides = [1, 1]} : vector<8x256xf32> to vector<8x64xf32>
    %23 = arith.mulf %20, %9 : vector<8x64xf32>
    %24 = arith.mulf %19, %21 : vector<8x64xf32>
    %25 = arith.addf %23, %24 : vector<8x64xf32>
    %26 = math.tanh %25 : vector<8x64xf32>
    %27 = arith.mulf %22, %26 : vector<8x64xf32>
    %c8 = arith.constant 8 : index
    %c0_15 = arith.constant 0 : index
    %28 = vector.load %arg7[%c8, %c0_15] : memref<64x256xf32, #tpu.memory_space<vmem>>, vector<8x256xf32>
    %cst_16 = arith.constant dense<0.000000e+00> : vector<8x256xf32>
    %29 = tpu.matmul %27, %7, %cst_16 {dimension_numbers = #tpu.dot_dimension_numbers<[1], [0], [0], [1], [0, 0, 1, 1], [], []>} : vector<8x64xf32>, vector<64x256xf32>, vector<8x256xf32> -> vector<8x256xf32>
    %30 = arith.addf %28, %29 : vector<8x256xf32>
    %31 = arith.negf %30 : vector<8x256xf32>
    %32 = math.exp %31 : vector<8x256xf32>
    %cst_17 = arith.constant 1.000000e+00 : f32
    %33 = vector.broadcast %cst_17 : f32 to vector<8x256xf32>
    %34 = arith.addf %33, %32 : vector<8x256xf32>
    %35 = arith.divf %33, %34 : vector<8x256xf32>
    %36 = math.tanh %30 : vector<8x256xf32>
    %37 = vector.extract_strided_slice %35 {offsets = [0, 0], sizes = [8, 64], strides = [1, 1]} : vector<8x256xf32> to vector<8x64xf32>
    %38 = vector.extract_strided_slice %35 {offsets = [0, 64], sizes = [8, 64], strides = [1, 1]} : vector<8x256xf32> to vector<8x64xf32>
    %39 = vector.extract_strided_slice %36 {offsets = [0, 128], sizes = [8, 64], strides = [1, 1]} : vector<8x256xf32> to vector<8x64xf32>
    %40 = vector.extract_strided_slice %35 {offsets = [0, 192], sizes = [8, 64], strides = [1, 1]} : vector<8x256xf32> to vector<8x64xf32>
    %41 = arith.mulf %38, %25 : vector<8x64xf32>
    %42 = arith.mulf %37, %39 : vector<8x64xf32>
    %43 = arith.addf %41, %42 : vector<8x64xf32>
    %44 = math.tanh %43 : vector<8x64xf32>
    %45 = arith.mulf %40, %44 : vector<8x64xf32>
    %c16 = arith.constant 16 : index
    %c0_18 = arith.constant 0 : index
    %46 = vector.load %arg7[%c16, %c0_18] : memref<64x256xf32, #tpu.memory_space<vmem>>, vector<8x256xf32>
    %cst_19 = arith.constant dense<0.000000e+00> : vector<8x256xf32>
    %47 = tpu.matmul %45, %7, %cst_19 {dimension_numbers = #tpu.dot_dimension_numbers<[1], [0], [0], [1], [0, 0, 1, 1], [], []>} : vector<8x64xf32>, vector<64x256xf32>, vector<8x256xf32> -> vector<8x256xf32>
    %48 = arith.addf %46, %47 : vector<8x256xf32>
    %49 = arith.negf %48 : vector<8x256xf32>
    %50 = math.exp %49 : vector<8x256xf32>
    %cst_20 = arith.constant 1.000000e+00 : f32
    %51 = vector.broadcast %cst_20 : f32 to vector<8x256xf32>
    %52 = arith.addf %51, %50 : vector<8x256xf32>
    %53 = arith.divf %51, %52 : vector<8x256xf32>
    %54 = math.tanh %48 : vector<8x256xf32>
    %55 = vector.extract_strided_slice %53 {offsets = [0, 0], sizes = [8, 64], strides = [1, 1]} : vector<8x256xf32> to vector<8x64xf32>
    %56 = vector.extract_strided_slice %53 {offsets = [0, 64], sizes = [8, 64], strides = [1, 1]} : vector<8x256xf32> to vector<8x64xf32>
    %57 = vector.extract_strided_slice %54 {offsets = [0, 128], sizes = [8, 64], strides = [1, 1]} : vector<8x256xf32> to vector<8x64xf32>
    %58 = vector.extract_strided_slice %53 {offsets = [0, 192], sizes = [8, 64], strides = [1, 1]} : vector<8x256xf32> to vector<8x64xf32>
    %59 = arith.mulf %56, %43 : vector<8x64xf32>
    %60 = arith.mulf %55, %57 : vector<8x64xf32>
    %61 = arith.addf %59, %60 : vector<8x64xf32>
    %62 = math.tanh %61 : vector<8x64xf32>
    %63 = arith.mulf %58, %62 : vector<8x64xf32>
    %c24 = arith.constant 24 : index
    %c0_21 = arith.constant 0 : index
    %64 = vector.load %arg7[%c24, %c0_21] : memref<64x256xf32, #tpu.memory_space<vmem>>, vector<8x256xf32>
    %cst_22 = arith.constant dense<0.000000e+00> : vector<8x256xf32>
    %65 = tpu.matmul %63, %7, %cst_22 {dimension_numbers = #tpu.dot_dimension_numbers<[1], [0], [0], [1], [0, 0, 1, 1], [], []>} : vector<8x64xf32>, vector<64x256xf32>, vector<8x256xf32> -> vector<8x256xf32>
    %66 = arith.addf %64, %65 : vector<8x256xf32>
    %67 = arith.negf %66 : vector<8x256xf32>
    %68 = math.exp %67 : vector<8x256xf32>
    %cst_23 = arith.constant 1.000000e+00 : f32
    %69 = vector.broadcast %cst_23 : f32 to vector<8x256xf32>
    %70 = arith.addf %69, %68 : vector<8x256xf32>
    %71 = arith.divf %69, %70 : vector<8x256xf32>
    %72 = math.tanh %66 : vector<8x256xf32>
    %73 = vector.extract_strided_slice %71 {offsets = [0, 0], sizes = [8, 64], strides = [1, 1]} : vector<8x256xf32> to vector<8x64xf32>
    %74 = vector.extract_strided_slice %71 {offsets = [0, 64], sizes = [8, 64], strides = [1, 1]} : vector<8x256xf32> to vector<8x64xf32>
    %75 = vector.extract_strided_slice %72 {offsets = [0, 128], sizes = [8, 64], strides = [1, 1]} : vector<8x256xf32> to vector<8x64xf32>
    %76 = vector.extract_strided_slice %71 {offsets = [0, 192], sizes = [8, 64], strides = [1, 1]} : vector<8x256xf32> to vector<8x64xf32>
    %77 = arith.mulf %74, %61 : vector<8x64xf32>
    %78 = arith.mulf %73, %75 : vector<8x64xf32>
    %79 = arith.addf %77, %78 : vector<8x64xf32>
    %80 = math.tanh %79 : vector<8x64xf32>
    %81 = arith.mulf %76, %80 : vector<8x64xf32>
    %c32 = arith.constant 32 : index
    %c0_24 = arith.constant 0 : index
    %82 = vector.load %arg7[%c32, %c0_24] : memref<64x256xf32, #tpu.memory_space<vmem>>, vector<8x256xf32>
    %cst_25 = arith.constant dense<0.000000e+00> : vector<8x256xf32>
    %83 = tpu.matmul %81, %7, %cst_25 {dimension_numbers = #tpu.dot_dimension_numbers<[1], [0], [0], [1], [0, 0, 1, 1], [], []>} : vector<8x64xf32>, vector<64x256xf32>, vector<8x256xf32> -> vector<8x256xf32>
    %84 = arith.addf %82, %83 : vector<8x256xf32>
    %85 = arith.negf %84 : vector<8x256xf32>
    %86 = math.exp %85 : vector<8x256xf32>
    %cst_26 = arith.constant 1.000000e+00 : f32
    %87 = vector.broadcast %cst_26 : f32 to vector<8x256xf32>
    %88 = arith.addf %87, %86 : vector<8x256xf32>
    %89 = arith.divf %87, %88 : vector<8x256xf32>
    %90 = math.tanh %84 : vector<8x256xf32>
    %91 = vector.extract_strided_slice %89 {offsets = [0, 0], sizes = [8, 64], strides = [1, 1]} : vector<8x256xf32> to vector<8x64xf32>
    %92 = vector.extract_strided_slice %89 {offsets = [0, 64], sizes = [8, 64], strides = [1, 1]} : vector<8x256xf32> to vector<8x64xf32>
    %93 = vector.extract_strided_slice %90 {offsets = [0, 128], sizes = [8, 64], strides = [1, 1]} : vector<8x256xf32> to vector<8x64xf32>
    %94 = vector.extract_strided_slice %89 {offsets = [0, 192], sizes = [8, 64], strides = [1, 1]} : vector<8x256xf32> to vector<8x64xf32>
    %95 = arith.mulf %92, %79 : vector<8x64xf32>
    %96 = arith.mulf %91, %93 : vector<8x64xf32>
    %97 = arith.addf %95, %96 : vector<8x64xf32>
    %98 = math.tanh %97 : vector<8x64xf32>
    %99 = arith.mulf %94, %98 : vector<8x64xf32>
    %c40 = arith.constant 40 : index
    %c0_27 = arith.constant 0 : index
    %100 = vector.load %arg7[%c40, %c0_27] : memref<64x256xf32, #tpu.memory_space<vmem>>, vector<8x256xf32>
    %cst_28 = arith.constant dense<0.000000e+00> : vector<8x256xf32>
    %101 = tpu.matmul %99, %7, %cst_28 {dimension_numbers = #tpu.dot_dimension_numbers<[1], [0], [0], [1], [0, 0, 1, 1], [], []>} : vector<8x64xf32>, vector<64x256xf32>, vector<8x256xf32> -> vector<8x256xf32>
    %102 = arith.addf %100, %101 : vector<8x256xf32>
    %103 = arith.negf %102 : vector<8x256xf32>
    %104 = math.exp %103 : vector<8x256xf32>
    %cst_29 = arith.constant 1.000000e+00 : f32
    %105 = vector.broadcast %cst_29 : f32 to vector<8x256xf32>
    %106 = arith.addf %105, %104 : vector<8x256xf32>
    %107 = arith.divf %105, %106 : vector<8x256xf32>
    %108 = math.tanh %102 : vector<8x256xf32>
    %109 = vector.extract_strided_slice %107 {offsets = [0, 0], sizes = [8, 64], strides = [1, 1]} : vector<8x256xf32> to vector<8x64xf32>
    %110 = vector.extract_strided_slice %107 {offsets = [0, 64], sizes = [8, 64], strides = [1, 1]} : vector<8x256xf32> to vector<8x64xf32>
    %111 = vector.extract_strided_slice %108 {offsets = [0, 128], sizes = [8, 64], strides = [1, 1]} : vector<8x256xf32> to vector<8x64xf32>
    %112 = vector.extract_strided_slice %107 {offsets = [0, 192], sizes = [8, 64], strides = [1, 1]} : vector<8x256xf32> to vector<8x64xf32>
    %113 = arith.mulf %110, %97 : vector<8x64xf32>
    %114 = arith.mulf %109, %111 : vector<8x64xf32>
    %115 = arith.addf %113, %114 : vector<8x64xf32>
    %116 = math.tanh %115 : vector<8x64xf32>
    %117 = arith.mulf %112, %116 : vector<8x64xf32>
    %c48 = arith.constant 48 : index
    %c0_30 = arith.constant 0 : index
    %118 = vector.load %arg7[%c48, %c0_30] : memref<64x256xf32, #tpu.memory_space<vmem>>, vector<8x256xf32>
    %cst_31 = arith.constant dense<0.000000e+00> : vector<8x256xf32>
    %119 = tpu.matmul %117, %7, %cst_31 {dimension_numbers = #tpu.dot_dimension_numbers<[1], [0], [0], [1], [0, 0, 1, 1], [], []>} : vector<8x64xf32>, vector<64x256xf32>, vector<8x256xf32> -> vector<8x256xf32>
    %120 = arith.addf %118, %119 : vector<8x256xf32>
    %121 = arith.negf %120 : vector<8x256xf32>
    %122 = math.exp %121 : vector<8x256xf32>
    %cst_32 = arith.constant 1.000000e+00 : f32
    %123 = vector.broadcast %cst_32 : f32 to vector<8x256xf32>
    %124 = arith.addf %123, %122 : vector<8x256xf32>
    %125 = arith.divf %123, %124 : vector<8x256xf32>
    %126 = math.tanh %120 : vector<8x256xf32>
    %127 = vector.extract_strided_slice %125 {offsets = [0, 0], sizes = [8, 64], strides = [1, 1]} : vector<8x256xf32> to vector<8x64xf32>
    %128 = vector.extract_strided_slice %125 {offsets = [0, 64], sizes = [8, 64], strides = [1, 1]} : vector<8x256xf32> to vector<8x64xf32>
    %129 = vector.extract_strided_slice %126 {offsets = [0, 128], sizes = [8, 64], strides = [1, 1]} : vector<8x256xf32> to vector<8x64xf32>
    %130 = vector.extract_strided_slice %125 {offsets = [0, 192], sizes = [8, 64], strides = [1, 1]} : vector<8x256xf32> to vector<8x64xf32>
    %131 = arith.mulf %128, %115 : vector<8x64xf32>
    %132 = arith.mulf %127, %129 : vector<8x64xf32>
    %133 = arith.addf %131, %132 : vector<8x64xf32>
    %134 = math.tanh %133 : vector<8x64xf32>
    %135 = arith.mulf %130, %134 : vector<8x64xf32>
    %c56 = arith.constant 56 : index
    %c0_33 = arith.constant 0 : index
    %136 = vector.load %arg7[%c56, %c0_33] : memref<64x256xf32, #tpu.memory_space<vmem>>, vector<8x256xf32>
    %cst_34 = arith.constant dense<0.000000e+00> : vector<8x256xf32>
    %137 = tpu.matmul %135, %7, %cst_34 {dimension_numbers = #tpu.dot_dimension_numbers<[1], [0], [0], [1], [0, 0, 1, 1], [], []>} : vector<8x64xf32>, vector<64x256xf32>, vector<8x256xf32> -> vector<8x256xf32>
    %138 = arith.addf %136, %137 : vector<8x256xf32>
    %139 = arith.negf %138 : vector<8x256xf32>
    %140 = math.exp %139 : vector<8x256xf32>
    %cst_35 = arith.constant 1.000000e+00 : f32
    %141 = vector.broadcast %cst_35 : f32 to vector<8x256xf32>
    %142 = arith.addf %141, %140 : vector<8x256xf32>
    %143 = arith.divf %141, %142 : vector<8x256xf32>
    %144 = math.tanh %138 : vector<8x256xf32>
    %145 = vector.extract_strided_slice %143 {offsets = [0, 0], sizes = [8, 64], strides = [1, 1]} : vector<8x256xf32> to vector<8x64xf32>
    %146 = vector.extract_strided_slice %143 {offsets = [0, 64], sizes = [8, 64], strides = [1, 1]} : vector<8x256xf32> to vector<8x64xf32>
    %147 = vector.extract_strided_slice %144 {offsets = [0, 128], sizes = [8, 64], strides = [1, 1]} : vector<8x256xf32> to vector<8x64xf32>
    %148 = vector.extract_strided_slice %143 {offsets = [0, 192], sizes = [8, 64], strides = [1, 1]} : vector<8x256xf32> to vector<8x64xf32>
    %149 = arith.mulf %146, %133 : vector<8x64xf32>
    %150 = arith.mulf %145, %147 : vector<8x64xf32>
    %151 = arith.addf %149, %150 : vector<8x64xf32>
    %152 = math.tanh %151 : vector<8x64xf32>
    %153 = arith.mulf %148, %152 : vector<8x64xf32>
    %c0_36 = arith.constant 0 : index
    %c0_37 = arith.constant 0 : index
    %154 = vector.load %arg4[%c0_36, %c0_37] : memref<64x10xf32, #tpu.memory_space<vmem>>, vector<64x10xf32>
    %cst_38 = arith.constant dense<0.000000e+00> : vector<8x10xf32>
    %155 = tpu.matmul %153, %154, %cst_38 {dimension_numbers = #tpu.dot_dimension_numbers<[1], [0], [0], [1], [0, 0, 1, 1], [], []>} : vector<8x64xf32>, vector<64x10xf32>, vector<8x10xf32> -> vector<8x10xf32>
    %c0_39 = arith.constant 0 : index
    %c0_40 = arith.constant 0 : index
    %156 = vector.load %arg5[%c0_39, %c0_40] : memref<1x10xf32, #tpu.memory_space<vmem>>, vector<1x10xf32>
    %157 = vector.broadcast %156 : vector<1x10xf32> to vector<8x10xf32>
    %158 = arith.addf %155, %157 : vector<8x10xf32>
    %c0_41 = arith.constant 0 : index
    %c0_42 = arith.constant 0 : index
    %159 = vector.load %arg6[%c0_41, %c0_42] : memref<8x10xf32, #tpu.memory_space<vmem>>, vector<8x10xf32>
    tpu.vector_store %arg6[%c0_41, %c0_42], %158 {strides = array<i32>} : memref<8x10xf32, #tpu.memory_space<vmem>>, vector<8x10xf32>,
    return
  }
}

</mosaic_0001>

<llo_original>
// kernel: tpu_custom_call.1
$region0: #{tpu_custom_call.1}
  #allocation0 [shape = 'u32[]', space=smem, size = 0x4, offset = 0x4, fixed_abs, tag = 'smem constant byte address 0x4 - core index']
  #allocation1 [shape = 'u32[72,128]{1,0:T(1,128)}', space=vmem, size = 0x9000, scoped, tag = 'internal scratch']
  #allocation2 [shape = 'f32[64,256]{1,0:T(8,128)}', space=vmem, size = 0x10000, scoped, tag = 'scratch operand']
  %s0 = inlined_call_operand.vmem [shape: f32[64,28], index: 0, kind: input, shape index: {}]
  %s1 = inlined_call_operand.hbm [shape: f32[28,256], index: 1, kind: input, shape index: {}]
  %s2 = inlined_call_operand.vmem [shape: f32[64,256], index: 2, kind: input, shape index: {}]
  %s3 = inlined_call_operand.vmem [shape: f32[1,256], index: 3, kind: input, shape index: {}]
  %s4 = inlined_call_operand.vmem [shape: f32[64,10], index: 4, kind: input, shape index: {}]
  %s5 = inlined_call_operand.vmem [shape: f32[1,10], index: 5, kind: input, shape index: {}]
  %s6 = inlined_call_operand.hbm [shape: f32[8,10], index: 6, kind: output, shape index: {}]
  %s7 = sld [smem:[#allocation0]]
  $region38: #{tpu_custom_call.1} parent=0
    _
  %s9 = ssub.s32 1, %s7
  %s10 = scalar_select 0, %s9, %s7
  $region1: #{tpu_custom_call.1} parent=0
    #allocation3 [shape = 'u8[32768]{0}', space=vmem, size = 0x8000, scoped, tag = 'input window, operand 1, single buffered']
    #allocation4 [shape = 's32[1]{0}', space=sflag, size = 0x4, scoped, tag = 'scoped memory for tpu_custom_call.1']
    #allocation5 [shape = 's32[1]{0}', space=sflag, size = 0x4, scoped, tag = 'scoped memory for tpu_custom_call.1']
    #allocation6 [shape = 'u8[4096]{0}', space=vmem, size = 0x1000, scoped, tag = 'output window, operand 0, single buffered']
    %11 = vsyncpa [#allocation4], 0
    %12 = vsyncpa [#allocation5], 0
    // Predicated region
    $region2: #{tpu_custom_call.1} parent=1 // pred_check
      _
    $region3: #{tpu_custom_call.1} parent=1 // pred_check_branch
      %14 = sbr.rel (0) target = $region5
    $region4: #{tpu_custom_call.1} parent=1 // pred_region
      _
    $region5: #{tpu_custom_call.1} parent=1 // pred_fallthru
      _
    // Predicated region
    $region6: #{tpu_custom_call.1} parent=1 // pred_check
      _
    $region7: #{tpu_custom_call.1} parent=1 // pred_check_branch
      %16 = sbr.rel (0) target = $region9
    $region8: #{tpu_custom_call.1} parent=1 // pred_region
      %18 = vsyncadd [#allocation4], 0
      %s19 = sshll.u32 %s1, 4
      %s20 = int_to_ptr.hbm [resolvable:$true] %s19
      %s21 = sshll.u32 [#allocation3], 4
      %s22 = int_to_ptr.vmem [resolvable:$true] %s21
      %27 = dma.hbm_to_vmem [thread:$0]  %s20, 1024, %s22, [#allocation4], 256, 256, 16
    $region9: #{tpu_custom_call.1} parent=1 // pred_fallthru
      _
    // Predicated region
    $region10: #{tpu_custom_call.1} parent=1 // pred_check
      _
    $region11: #{tpu_custom_call.1} parent=1 // pred_check_branch
      %29 = sbr.rel (0) target = $region13
    $region12: #{tpu_custom_call.1} parent=1 // pred_region
      _
    $region13: #{tpu_custom_call.1} parent=1 // pred_fallthru
      _
    // Predicated region
    $region14: #{tpu_custom_call.1} parent=1 // pred_check
      _
    $region15: #{tpu_custom_call.1} parent=1 // pred_check_branch
      %31 = sbr.rel (0) target = $region17
    $region16: #{tpu_custom_call.1} parent=1 // pred_region
      _
    $region17: #{tpu_custom_call.1} parent=1 // pred_fallthru
      _
    // Predicated region
    $region18: #{tpu_custom_call.1} parent=1 // pred_check
      _
    $region19: #{tpu_custom_call.1} parent=1 // pred_check_branch
      %33 = sbr.rel (0) target = $region21
    $region20: #{tpu_custom_call.1} parent=1 // pred_region
      _
    $region21: #{tpu_custom_call.1} parent=1 // pred_fallthru
      _
    // Predicated region
    $region22: #{tpu_custom_call.1} parent=1 // pred_check
      _
    $region23: #{tpu_custom_call.1} parent=1 // pred_check_branch
      %35 = sbr.rel (0) target = $region25
    $region24: #{tpu_custom_call.1} parent=1 // pred_region
      _
    $region25: #{tpu_custom_call.1} parent=1 // pred_fallthru
      _
    // Predicated region
    $region26: #{tpu_custom_call.1} parent=1 // pred_check
      _
    $region27: #{tpu_custom_call.1} parent=1 // pred_check_branch
      %37 = sbr.rel (0) target = $region29
    $region28: #{tpu_custom_call.1} parent=1 // pred_region
      %39 = dma.done [#allocation4], 1024
    $region29: #{tpu_custom_call.1} parent=1 // pred_fallthru
      _
    %v40 = vld [vmem:[%s0] sm:$0xff]
    %v41 = vld [vmem:[%s0 + $0x8] sm:$0xff]
    %v42 = vld [vmem:[%s0 + $0x10] sm:$0xff]
    %v43 = vld [vmem:[%s0 + $0x18] sm:$0xff]
    %v44 = vld [vmem:[%s0 + $0x20] sm:$0xff]
    %v45 = vld [vmem:[%s0 + $0x28] sm:$0xff]
    %v46 = vld [vmem:[%s0 + $0x30] sm:$0xff]
    %v47 = vld [vmem:[%s0 + $0x38] sm:$0xff]
    %v48 = vld [vmem:[#allocation3] sm:$0xff]
    %v49 = vld [vmem:[#allocation3 + $0x8] sm:$0xff]
    %v50 = vld [vmem:[#allocation3 + $0x10] sm:$0xff]
    %v51 = vld [vmem:[#allocation3 + $0x18] sm:$0xff]
    %v52 = vld [vmem:[#allocation3 + $0x20] sm:$0xff]
    %v53 = vld [vmem:[#allocation3 + $0x28] sm:$0xff]
    %v54 = vld [vmem:[#allocation3 + $0x30] sm:$0xf]
    %v55 = vld [vmem:[#allocation3 + $0x38] sm:$0xf]
    %v56 = vld [vmem:[%s3] sm:$0x3]
    %v58 = vperm.slane %v56, 0
    %v59 = vperm.slane %v56, 1
    %vm62 = vcmask 228352
    %v64 = vsel %vm62, %v40, 0
    %v67 = vsel %vm62, %v41, 0
    %v70 = vsel %vm62, %v42, 0
    %v73 = vsel %vm62, %v43, 0
    %v76 = vsel %vm62, %v44, 0
    %v79 = vsel %vm62, %v45, 0
    %v82 = vsel %vm62, %v46, 0
    %v85 = vsel %vm62, %v47, 0
    %vm87 = vcmask 1043456
    %v89 = vsel %vm87, %v54, 0
    %v92 = vsel %vm87, %v55, 0
    %94 = vmatpush.msra.mxu0 0.0
    %95 = vmatpush.msra.mxu0 0.0
    %96 = vmatpush.msra.mxu0 0.0
    %97 = vmatpush.msra.mxu0 0.0
    %98 = vmatpush.msra.mxu0 0.0
    %99 = vmatpush.msra.mxu0 0.0
    %100 = vmatpush.msra.mxu0 0.0
    %101 = vmatpush.msra.mxu0 0.0
    %102 = vmatpush.msra.mxu0 0.0
    %103 = vmatpush.msra.mxu0 0.0
    %104 = vmatpush.msra.mxu0 0.0
    %105 = vmatpush.msra.mxu0 0.0
    %106 = vmatpush.msra.mxu0 %v89
    %107 = vmatpush.msra.mxu0 %v52
    %108 = vmatpush.msra.mxu0 %v50
    %109 = vmatpush.msra.mxu0 %v48
    %110 = vmatmul.f32.gmra.mxu0 %v64
    %v111 = vpop.f32.mrf.mxu0
    %v112 = vadd.f32 %v58, %v111
    %113 = vmatmul.f32.gmra.mxu0 %v67
    %v114 = vpop.f32.mrf.mxu0
    %v115 = vadd.f32 %v58, %v114
    %116 = vmatmul.f32.gmra.mxu0 %v70
    %v117 = vpop.f32.mrf.mxu0
    %v118 = vadd.f32 %v58, %v117
    %119 = vmatmul.f32.gmra.mxu0 %v73
    %v120 = vpop.f32.mrf.mxu0
    %v121 = vadd.f32 %v58, %v120
    %122 = vmatmul.f32.gmra.mxu0 %v76
    %v123 = vpop.f32.mrf.mxu0
    %v124 = vadd.f32 %v58, %v123
    %125 = vmatmul.f32.gmra.mxu0 %v79
    %v126 = vpop.f32.mrf.mxu0
    %v127 = vadd.f32 %v58, %v126
    %128 = vmatmul.f32.gmra.mxu0 %v82
    %v129 = vpop.f32.mrf.mxu0
    %v130 = vadd.f32 %v58, %v129
    %131 = vmatmul.f32.gmra.mxu0 %v85
    %v132 = vpop.f32.mrf.mxu0
    %v133 = vadd.f32 %v58, %v132
    %134 = vdwg.mxu0
    %135 = vmatpush.msra.mxu0 0.0
    %136 = vmatpush.msra.mxu0 0.0
    %137 = vmatpush.msra.mxu0 0.0
    %138 = vmatpush.msra.mxu0 0.0
    %139 = vmatpush.msra.mxu0 0.0
    %140 = vmatpush.msra.mxu0 0.0
    %141 = vmatpush.msra.mxu0 0.0
    %142 = vmatpush.msra.mxu0 0.0
    %143 = vmatpush.msra.mxu0 0.0
    %144 = vmatpush.msra.mxu0 0.0
    %145 = vmatpush.msra.mxu0 0.0
    %146 = vmatpush.msra.mxu0 0.0
    %147 = vmatpush.msra.mxu0 %v92
    %148 = vmatpush.msra.mxu0 %v53
    %149 = vmatpush.msra.mxu0 %v51
    %150 = vmatpush.msra.mxu0 %v49
    %151 = vmatmul.f32.gmra.mxu0 %v64
    %v152 = vpop.f32.mrf.mxu0
    %v153 = vadd.f32 %v59, %v152
    %154 = vmatmul.f32.gmra.mxu0 %v67
    %v155 = vpop.f32.mrf.mxu0
    %v156 = vadd.f32 %v59, %v155
    %157 = vmatmul.f32.gmra.mxu0 %v70
    %v158 = vpop.f32.mrf.mxu0
    %v159 = vadd.f32 %v59, %v158
    %160 = vmatmul.f32.gmra.mxu0 %v73
    %v161 = vpop.f32.mrf.mxu0
    %v162 = vadd.f32 %v59, %v161
    %163 = vmatmul.f32.gmra.mxu0 %v76
    %v164 = vpop.f32.mrf.mxu0
    %v165 = vadd.f32 %v59, %v164
    %166 = vmatmul.f32.gmra.mxu0 %v79
    %v167 = vpop.f32.mrf.mxu0
    %v168 = vadd.f32 %v59, %v167
    %169 = vmatmul.f32.gmra.mxu0 %v82
    %v170 = vpop.f32.mrf.mxu0
    %v171 = vadd.f32 %v59, %v170
    %172 = vmatmul.f32.gmra.mxu0 %v85
    %v173 = vpop.f32.mrf.mxu0
    %v174 = vadd.f32 %v59, %v173
    %175 = vdwg.mxu0
    %176 = vst [vmem:[#allocation2] sm:$0xff] %v112
    %177 = vst [vmem:[#allocation2 + $0x8] sm:$0xff] %v153
    %178 = vst [vmem:[#allocation2 + $0x10] sm:$0xff] %v115
    %179 = vst [vmem:[#allocation2 + $0x18] sm:$0xff] %v156
    %180 = vst [vmem:[#allocation2 + $0x20] sm:$0xff] %v118
    %181 = vst [vmem:[#allocation2 + $0x28] sm:$0xff] %v159
    %182 = vst [vmem:[#allocation2 + $0x30] sm:$0xff] %v121
    %183 = vst [vmem:[#allocation2 + $0x38] sm:$0xff] %v162
    %184 = vst [vmem:[#allocation2 + $0x40] sm:$0xff] %v124
    %185 = vst [vmem:[#allocation2 + $0x48] sm:$0xff] %v165
    %186 = vst [vmem:[#allocation2 + $0x50] sm:$0xff] %v127
    %187 = vst [vmem:[#allocation2 + $0x58] sm:$0xff] %v168
    %188 = vst [vmem:[#allocation2 + $0x60] sm:$0xff] %v130
    %189 = vst [vmem:[#allocation2 + $0x68] sm:$0xff] %v171
    %190 = vst [vmem:[#allocation2 + $0x70] sm:$0xff] %v133
    %191 = vst [vmem:[#allocation2 + $0x78] sm:$0xff] %v174
    %v192 = vld [vmem:[%s2] sm:$0xff]
    %v193 = vld [vmem:[%s2 + $0x8] sm:$0xff]
    %v194 = vld [vmem:[%s2 + $0x10] sm:$0xff]
    %v195 = vld [vmem:[%s2 + $0x18] sm:$0xff]
    %v196 = vld [vmem:[%s2 + $0x20] sm:$0xff]
    %v197 = vld [vmem:[%s2 + $0x28] sm:$0xff]
    %v198 = vld [vmem:[%s2 + $0x30] sm:$0xff]
    %v199 = vld [vmem:[%s2 + $0x38] sm:$0xff]
    %v200 = vld [vmem:[%s2 + $0x40] sm:$0xff]
    %v201 = vld [vmem:[%s2 + $0x48] sm:$0xff]
    %v202 = vld [vmem:[%s2 + $0x50] sm:$0xff]
    %v203 = vld [vmem:[%s2 + $0x58] sm:$0xff]
    %v204 = vld [vmem:[%s2 + $0x60] sm:$0xff]
    %v205 = vld [vmem:[%s2 + $0x68] sm:$0xff]
    %v206 = vld [vmem:[%s2 + $0x70] sm:$0xff]
    %v207 = vld [vmem:[%s2 + $0x78] sm:$0xff]
    %v208 = vld [vmem:[#allocation2] sm:$0xff]
    %v209 = vld [vmem:[#allocation2 + $0x8] sm:$0xff]
    %vm210 = vcmask 523264
    %v212 = vsel %vm210, 0.0, 0
    %214 = vmatpush.msra.mxu0 0.0
    %215 = vmatpush.msra.mxu0 0.0
    %216 = vmatpush.msra.mxu0 0.0
    %217 = vmatpush.msra.mxu0 0.0
    %218 = vmatpush.msra.mxu0 0.0
    %219 = vmatpush.msra.mxu0 0.0
    %220 = vmatpush.msra.mxu0 0.0
    %221 = vmatpush.msra.mxu0 0.0
    %222 = vmatpush.msra.mxu0 %v206
    %223 = vmatpush.msra.mxu0 %v204
    %224 = vmatpush.msra.mxu0 %v202
    %225 = vmatpush.msra.mxu0 %v200
    %226 = vmatpush.msra.mxu0 %v198
    %227 = vmatpush.msra.mxu0 %v196
    %228 = vmatpush.msra.mxu0 %v194
    %229 = vmatpush.msra.mxu0 %v192
    %230 = vmatmul.f32.gmra.mxu0 %v212
    %v231 = vpop.f32.mrf.mxu0
    %v232 = vadd.f32 0.0, %v231
    %233 = vdwg.mxu0
    %234 = vmatpush.msra.mxu0 0.0
    %235 = vmatpush.msra.mxu0 0.0
    %236 = vmatpush.msra.mxu0 0.0
    %237 = vmatpush.msra.mxu0 0.0
    %238 = vmatpush.msra.mxu0 0.0
    %239 = vmatpush.msra.mxu0 0.0
    %240 = vmatpush.msra.mxu0 0.0
    %241 = vmatpush.msra.mxu0 0.0
    %242 = vmatpush.msra.mxu0 %v207
    %243 = vmatpush.msra.mxu0 %v205
    %244 = vmatpush.msra.mxu0 %v203
    %245 = vmatpush.msra.mxu0 %v201
    %246 = vmatpush.msra.mxu0 %v199
    %247 = vmatpush.msra.mxu0 %v197
    %248 = vmatpush.msra.mxu0 %v195
    %249 = vmatpush.msra.mxu0 %v193
    %250 = vmatmul.f32.gmra.mxu0 %v212
    %v251 = vpop.f32.mrf.mxu0
    %v252 = vadd.f32 0.0, %v251
    %253 = vdwg.mxu0
    %v254 = vadd.f32 %v208, %v232
    %v255 = vadd.f32 %v209, %v252
    %v256 = vxor.u32 %v254, 2147483648
    %v257 = vxor.u32 %v255, 2147483648
    %v258 = vmul.f32 %v256, 1.442695
    %v259 = vpow.pop %v258
    %v260 = vmul.f32 %v257, 1.442695
    %v261 = vpow.pop %v260
    %v262 = vadd.f32 %v259, 1.0
    %v263 = vadd.f32 %v261, 1.0
    %v264 = vrcp.pop %v262
    %v265 = vmul.f32 %v262, %v264
    %v266 = vsub.f32 1.0, %v265
    %v267 = vmul.f32 %v264, %v266
    %v268 = vadd.f32 %v264, %v267
    %vm269 = vweird.f32 %v262
    %vm270 = vweird.f32 %v264
    %vm271 = vmor %vm269, %vm270
    %v272 = vsel %vm271, %v264, %v268
    %v273 = vand.u32 2147483647, %v262
    %vm274 = vcmp.eq.f32.partialorder %v273, 8.507059e+37
    %v275 = vand.u32 %v262, 2147483648
    %v276 = vor.u32 1.1754944e-38, %v275
    %v277 = vsel %vm274, %v276, %v272
    %v278 = vmul.f32 1.0, %v277
    %v279 = vrcp.pop %v263
    %v280 = vmul.f32 %v263, %v279
    %v281 = vsub.f32 1.0, %v280
    %v282 = vmul.f32 %v279, %v281
    %v283 = vadd.f32 %v279, %v282
    %vm284 = vweird.f32 %v263
    %vm285 = vweird.f32 %v279
    %vm286 = vmor %vm284, %vm285
    %v287 = vsel %vm286, %v279, %v283
    %v288 = vand.u32 2147483647, %v263
    %vm289 = vcmp.eq.f32.partialorder %v288, 8.507059e+37
    %v290 = vand.u32 %v263, 2147483648
    %v291 = vor.u32 1.1754944e-38, %v290
    %v292 = vsel %vm289, %v291, %v287
    %v293 = vmul.f32 1.0, %v292
    %v294 = vtanh.pop %v255
    %v295 = vmul.f32 %v278, 0.0
    %v296 = vmul.f32 %v278, %v294
    %298 = vrot.lane.b32.xlu0 %v296, 64
    %v299 = vpop.permute.xlu0 %298
    %v301 = vadd.f32 %v295, %v299
    %v302 = vtanh.pop %v301
    %v303 = vmul.f32 %v293, %v302
    %v304 = vld [vmem:[#allocation2 + $0x10] sm:$0xff]
    %v305 = vld [vmem:[#allocation2 + $0x18] sm:$0xff]
    %307 = vrot.lane.b32.xlu0 %v303, 64
    %v308 = vpop.permute.xlu0 %307
    %v309 = vsel %vm210, %v308, 0
    %311 = vmatpush.msra.mxu0 0.0
    %312 = vmatpush.msra.mxu0 0.0
    %313 = vmatpush.msra.mxu0 0.0
    %314 = vmatpush.msra.mxu0 0.0
    %315 = vmatpush.msra.mxu0 0.0
    %316 = vmatpush.msra.mxu0 0.0
    %317 = vmatpush.msra.mxu0 0.0
    %318 = vmatpush.msra.mxu0 0.0
    %319 = vmatpush.msra.mxu0 %v206
    %320 = vmatpush.msra.mxu0 %v204
    %321 = vmatpush.msra.mxu0 %v202
    %322 = vmatpush.msra.mxu0 %v200
    %323 = vmatpush.msra.mxu0 %v198
    %324 = vmatpush.msra.mxu0 %v196
    %325 = vmatpush.msra.mxu0 %v194
    %326 = vmatpush.msra.mxu0 %v192
    %327 = vmatmul.f32.gmra.mxu0 %v309
    %v328 = vpop.f32.mrf.mxu0
    %v329 = vadd.f32 0.0, %v328
    %330 = vdwg.mxu0
    %331 = vmatpush.msra.mxu0 0.0
    %332 = vmatpush.msra.mxu0 0.0
    %333 = vmatpush.msra.mxu0 0.0
    %334 = vmatpush.msra.mxu0 0.0
    %335 = vmatpush.msra.mxu0 0.0
    %336 = vmatpush.msra.mxu0 0.0
    %337 = vmatpush.msra.mxu0 0.0
    %338 = vmatpush.msra.mxu0 0.0
    %339 = vmatpush.msra.mxu0 %v207
    %340 = vmatpush.msra.mxu0 %v205
    %341 = vmatpush.msra.mxu0 %v203
    %342 = vmatpush.msra.mxu0 %v201
    %343 = vmatpush.msra.mxu0 %v199
    %344 = vmatpush.msra.mxu0 %v197
    %345 = vmatpush.msra.mxu0 %v195
    %346 = vmatpush.msra.mxu0 %v193
    %347 = vmatmul.f32.gmra.mxu0 %v309
    %v348 = vpop.f32.mrf.mxu0
    %v349 = vadd.f32 0.0, %v348
    %350 = vdwg.mxu0
    %v351 = vadd.f32 %v304, %v329
    %v352 = vadd.f32 %v305, %v349
    %v353 = vxor.u32 %v351, 2147483648
    %v354 = vxor.u32 %v352, 2147483648
    %v355 = vmul.f32 %v353, 1.442695
    %v356 = vpow.pop %v355
    %v357 = vmul.f32 %v354, 1.442695
    %v358 = vpow.pop %v357
    %v359 = vadd.f32 %v356, 1.0
    %v360 = vadd.f32 %v358, 1.0
    %v361 = vrcp.pop %v359
    %v362 = vmul.f32 %v359, %v361
    %v363 = vsub.f32 1.0, %v362
    %v364 = vmul.f32 %v361, %v363
    %v365 = vadd.f32 %v361, %v364
    %vm366 = vweird.f32 %v359
    %vm367 = vweird.f32 %v361
    %vm368 = vmor %vm366, %vm367
    %v369 = vsel %vm368, %v361, %v365
    %v370 = vand.u32 2147483647, %v359
    %vm371 = vcmp.eq.f32.partialorder %v370, 8.507059e+37
    %v372 = vand.u32 %v359, 2147483648
    %v373 = vor.u32 1.1754944e-38, %v372
    %v374 = vsel %vm371, %v373, %v369
    %v375 = vmul.f32 1.0, %v374
    %v376 = vrcp.pop %v360
    %v377 = vmul.f32 %v360, %v376
    %v378 = vsub.f32 1.0, %v377
    %v379 = vmul.f32 %v376, %v378
    %v380 = vadd.f32 %v376, %v379
    %vm381 = vweird.f32 %v360
    %vm382 = vweird.f32 %v376
    %vm383 = vmor %vm381, %vm382
    %v384 = vsel %vm383, %v376, %v380
    %v385 = vand.u32 2147483647, %v360
    %vm386 = vcmp.eq.f32.partialorder %v385, 8.507059e+37
    %v387 = vand.u32 %v360, 2147483648
    %v388 = vor.u32 1.1754944e-38, %v387
    %v389 = vsel %vm386, %v388, %v384
    %v390 = vmul.f32 1.0, %v389
    %v391 = vtanh.pop %v352
    %v392 = vmul.f32 %v375, %v301
    %v393 = vmul.f32 %v375, %v391
    %395 = vrot.lane.b32.xlu0 %v393, 64
    %v396 = vpop.permute.xlu0 %395
    %v398 = vadd.f32 %v392, %v396
    %v399 = vtanh.pop %v398
    %v400 = vmul.f32 %v390, %v399
    %v401 = vld [vmem:[#allocation2 + $0x20] sm:$0xff]
    %v402 = vld [vmem:[#allocation2 + $0x28] sm:$0xff]
    %404 = vrot.lane.b32.xlu0 %v400, 64
    %v405 = vpop.permute.xlu0 %404
    %v406 = vsel %vm210, %v405, 0
    %408 = vmatpush.msra.mxu0 0.0
    %409 = vmatpush.msra.mxu0 0.0
    %410 = vmatpush.msra.mxu0 0.0
    %411 = vmatpush.msra.mxu0 0.0
    %412 = vmatpush.msra.mxu0 0.0
    %413 = vmatpush.msra.mxu0 0.0
    %414 = vmatpush.msra.mxu0 0.0
    %415 = vmatpush.msra.mxu0 0.0
    %416 = vmatpush.msra.mxu0 %v206
    %417 = vmatpush.msra.mxu0 %v204
    %418 = vmatpush.msra.mxu0 %v202
    %419 = vmatpush.msra.mxu0 %v200
    %420 = vmatpush.msra.mxu0 %v198
    %421 = vmatpush.msra.mxu0 %v196
    %422 = vmatpush.msra.mxu0 %v194
    %423 = vmatpush.msra.mxu0 %v192
    %424 = vmatmul.f32.gmra.mxu0 %v406
    %v425 = vpop.f32.mrf.mxu0
    %v426 = vadd.f32 0.0, %v425
    %427 = vdwg.mxu0
    %428 = vmatpush.msra.mxu0 0.0
    %429 = vmatpush.msra.mxu0 0.0
    %430 = vmatpush.msra.mxu0 0.0
    %431 = vmatpush.msra.mxu0 0.0
    %432 = vmatpush.msra.mxu0 0.0
    %433 = vmatpush.msra.mxu0 0.0
    %434 = vmatpush.msra.mxu0 0.0
    %435 = vmatpush.msra.mxu0 0.0
    %436 = vmatpush.msra.mxu0 %v207
    %437 = vmatpush.msra.mxu0 %v205
    %438 = vmatpush.msra.mxu0 %v203
    %439 = vmatpush.msra.mxu0 %v201
    %440 = vmatpush.msra.mxu0 %v199
    %441 = vmatpush.msra.mxu0 %v197
    %442 = vmatpush.msra.mxu0 %v195
    %443 = vmatpush.msra.mxu0 %v193
    %444 = vmatmul.f32.gmra.mxu0 %v406
    %v445 = vpop.f32.mrf.mxu0
    %v446 = vadd.f32 0.0, %v445
    %447 = vdwg.mxu0
    %v448 = vadd.f32 %v401, %v426
    %v449 = vadd.f32 %v402, %v446
    %v450 = vxor.u32 %v448, 2147483648
    %v451 = vxor.u32 %v449, 2147483648
    %v452 = vmul.f32 %v450, 1.442695
    %v453 = vpow.pop %v452
    %v454 = vmul.f32 %v451, 1.442695
    %v455 = vpow.pop %v454
    %v456 = vadd.f32 %v453, 1.0
    %v457 = vadd.f32 %v455, 1.0
    %v458 = vrcp.pop %v456
    %v459 = vmul.f32 %v456, %v458
    %v460 = vsub.f32 1.0, %v459
    %v461 = vmul.f32 %v458, %v460
    %v462 = vadd.f32 %v458, %v461
    %vm463 = vweird.f32 %v456
    %vm464 = vweird.f32 %v458
    %vm465 = vmor %vm463, %vm464
    %v466 = vsel %vm465, %v458, %v462
    %v467 = vand.u32 2147483647, %v456
    %vm468 = vcmp.eq.f32.partialorder %v467, 8.507059e+37
    %v469 = vand.u32 %v456, 2147483648
    %v470 = vor.u32 1.1754944e-38, %v469
    %v471 = vsel %vm468, %v470, %v466
    %v472 = vmul.f32 1.0, %v471
    %v473 = vrcp.pop %v457
    %v474 = vmul.f32 %v457, %v473
    %v475 = vsub.f32 1.0, %v474
    %v476 = vmul.f32 %v473, %v475
    %v477 = vadd.f32 %v473, %v476
    %vm478 = vweird.f32 %v457
    %vm479 = vweird.f32 %v473
    %vm480 = vmor %vm478, %vm479
    %v481 = vsel %vm480, %v473, %v477
    %v482 = vand.u32 2147483647, %v457
    %vm483 = vcmp.eq.f32.partialorder %v482, 8.507059e+37
    %v484 = vand.u32 %v457, 2147483648
    %v485 = vor.u32 1.1754944e-38, %v484
    %v486 = vsel %vm483, %v485, %v481
    %v487 = vmul.f32 1.0, %v486
    %v488 = vtanh.pop %v449
    %v489 = vmul.f32 %v472, %v398
    %v490 = vmul.f32 %v472, %v488
    %492 = vrot.lane.b32.xlu0 %v490, 64
    %v493 = vpop.permute.xlu0 %492
    %v495 = vadd.f32 %v489, %v493
    %v496 = vtanh.pop %v495
    %v497 = vmul.f32 %v487, %v496
    %v498 = vld [vmem:[#allocation2 + $0x30] sm:$0xff]
    %v499 = vld [vmem:[#allocation2 + $0x38] sm:$0xff]
    %501 = vrot.lane.b32.xlu0 %v497, 64
    %v502 = vpop.permute.xlu0 %501
    %v503 = vsel %vm210, %v502, 0
    %505 = vmatpush.msra.mxu0 0.0
    %506 = vmatpush.msra.mxu0 0.0
    %507 = vmatpush.msra.mxu0 0.0
    %508 = vmatpush.msra.mxu0 0.0
    %509 = vmatpush.msra.mxu0 0.0
    %510 = vmatpush.msra.mxu0 0.0
    %511 = vmatpush.msra.mxu0 0.0
    %512 = vmatpush.msra.mxu0 0.0
    %513 = vmatpush.msra.mxu0 %v206
    %514 = vmatpush.msra.mxu0 %v204
    %515 = vmatpush.msra.mxu0 %v202
    %516 = vmatpush.msra.mxu0 %v200
    %517 = vmatpush.msra.mxu0 %v198
    %518 = vmatpush.msra.mxu0 %v196
    %519 = vmatpush.msra.mxu0 %v194
    %520 = vmatpush.msra.mxu0 %v192
    %521 = vmatmul.f32.gmra.mxu0 %v503
    %v522 = vpop.f32.mrf.mxu0
    %v523 = vadd.f32 0.0, %v522
    %524 = vdwg.mxu0
    %525 = vmatpush.msra.mxu0 0.0
    %526 = vmatpush.msra.mxu0 0.0
    %527 = vmatpush.msra.mxu0 0.0
    %528 = vmatpush.msra.mxu0 0.0
    %529 = vmatpush.msra.mxu0 0.0
    %530 = vmatpush.msra.mxu0 0.0
    %531 = vmatpush.msra.mxu0 0.0
    %532 = vmatpush.msra.mxu0 0.0
    %533 = vmatpush.msra.mxu0 %v207
    %534 = vmatpush.msra.mxu0 %v205
    %535 = vmatpush.msra.mxu0 %v203
    %536 = vmatpush.msra.mxu0 %v201
    %537 = vmatpush.msra.mxu0 %v199
    %538 = vmatpush.msra.mxu0 %v197
    %539 = vmatpush.msra.mxu0 %v195
    %540 = vmatpush.msra.mxu0 %v193
    %541 = vmatmul.f32.gmra.mxu0 %v503
    %v542 = vpop.f32.mrf.mxu0
    %v543 = vadd.f32 0.0, %v542
    %544 = vdwg.mxu0
    %v545 = vadd.f32 %v498, %v523
    %v546 = vadd.f32 %v499, %v543
    %v547 = vxor.u32 %v545, 2147483648
    %v548 = vxor.u32 %v546, 2147483648
    %v549 = vmul.f32 %v547, 1.442695
    %v550 = vpow.pop %v549
    %v551 = vmul.f32 %v548, 1.442695
    %v552 = vpow.pop %v551
    %v553 = vadd.f32 %v550, 1.0
    %v554 = vadd.f32 %v552, 1.0
    %v555 = vrcp.pop %v553
    %v556 = vmul.f32 %v553, %v555
    %v557 = vsub.f32 1.0, %v556
    %v558 = vmul.f32 %v555, %v557
    %v559 = vadd.f32 %v555, %v558
    %vm560 = vweird.f32 %v553
    %vm561 = vweird.f32 %v555
    %vm562 = vmor %vm560, %vm561
    %v563 = vsel %vm562, %v555, %v559
    %v564 = vand.u32 2147483647, %v553
    %vm565 = vcmp.eq.f32.partialorder %v564, 8.507059e+37
    %v566 = vand.u32 %v553, 2147483648
    %v567 = vor.u32 1.1754944e-38, %v566
    %v568 = vsel %vm565, %v567, %v563
    %v569 = vmul.f32 1.0, %v568
    %v570 = vrcp.pop %v554
    %v571 = vmul.f32 %v554, %v570
    %v572 = vsub.f32 1.0, %v571
    %v573 = vmul.f32 %v570, %v572
    %v574 = vadd.f32 %v570, %v573
    %vm575 = vweird.f32 %v554
    %vm576 = vweird.f32 %v570
    %vm577 = vmor %vm575, %vm576
    %v578 = vsel %vm577, %v570, %v574
    %v579 = vand.u32 2147483647, %v554
    %vm580 = vcmp.eq.f32.partialorder %v579, 8.507059e+37
    %v581 = vand.u32 %v554, 2147483648
    %v582 = vor.u32 1.1754944e-38, %v581
    %v583 = vsel %vm580, %v582, %v578
    %v584 = vmul.f32 1.0, %v583
    %v585 = vtanh.pop %v546
    %v586 = vmul.f32 %v569, %v495
    %v587 = vmul.f32 %v569, %v585
    %589 = vrot.lane.b32.xlu0 %v587, 64
    %v590 = vpop.permute.xlu0 %589
    %v592 = vadd.f32 %v586, %v590
    %v593 = vtanh.pop %v592
    %v594 = vmul.f32 %v584, %v593
    %v595 = vld [vmem:[#allocation2 + $0x40] sm:$0xff]
    %v596 = vld [vmem:[#allocation2 + $0x48] sm:$0xff]
    %598 = vrot.lane.b32.xlu0 %v594, 64
    %v599 = vpop.permute.xlu0 %598
    %v600 = vsel %vm210, %v599, 0
    %602 = vmatpush.msra.mxu0 0.0
    %603 = vmatpush.msra.mxu0 0.0
    %604 = vmatpush.msra.mxu0 0.0
    %605 = vmatpush.msra.mxu0 0.0
    %606 = vmatpush.msra.mxu0 0.0
    %607 = vmatpush.msra.mxu0 0.0
    %608 = vmatpush.msra.mxu0 0.0
    %609 = vmatpush.msra.mxu0 0.0
    %610 = vmatpush.msra.mxu0 %v206
    %611 = vmatpush.msra.mxu0 %v204
    %612 = vmatpush.msra.mxu0 %v202
    %613 = vmatpush.msra.mxu0 %v200
    %614 = vmatpush.msra.mxu0 %v198
    %615 = vmatpush.msra.mxu0 %v196
    %616 = vmatpush.msra.mxu0 %v194
    %617 = vmatpush.msra.mxu0 %v192
    %618 = vmatmul.f32.gmra.mxu0 %v600
    %v619 = vpop.f32.mrf.mxu0
    %v620 = vadd.f32 0.0, %v619
    %621 = vdwg.mxu0
    %622 = vmatpush.msra.mxu0 0.0
    %623 = vmatpush.msra.mxu0 0.0
    %624 = vmatpush.msra.mxu0 0.0
    %625 = vmatpush.msra.mxu0 0.0
    %626 = vmatpush.msra.mxu0 0.0
    %627 = vmatpush.msra.mxu0 0.0
    %628 = vmatpush.msra.mxu0 0.0
    %629 = vmatpush.msra.mxu0 0.0
    %630 = vmatpush.msra.mxu0 %v207
    %631 = vmatpush.msra.mxu0 %v205
    %632 = vmatpush.msra.mxu0 %v203
    %633 = vmatpush.msra.mxu0 %v201
    %634 = vmatpush.msra.mxu0 %v199
    %635 = vmatpush.msra.mxu0 %v197
    %636 = vmatpush.msra.mxu0 %v195
    %637 = vmatpush.msra.mxu0 %v193
    %638 = vmatmul.f32.gmra.mxu0 %v600
    %v639 = vpop.f32.mrf.mxu0
    %v640 = vadd.f32 0.0, %v639
    %641 = vdwg.mxu0
    %v642 = vadd.f32 %v595, %v620
    %v643 = vadd.f32 %v596, %v640
    %v644 = vxor.u32 %v642, 2147483648
    %v645 = vxor.u32 %v643, 2147483648
    %v646 = vmul.f32 %v644, 1.442695
    %v647 = vpow.pop %v646
    %v648 = vmul.f32 %v645, 1.442695
    %v649 = vpow.pop %v648
    %v650 = vadd.f32 %v647, 1.0
    %v651 = vadd.f32 %v649, 1.0
    %v652 = vrcp.pop %v650
    %v653 = vmul.f32 %v650, %v652
    %v654 = vsub.f32 1.0, %v653
    %v655 = vmul.f32 %v652, %v654
    %v656 = vadd.f32 %v652, %v655
    %vm657 = vweird.f32 %v650
    %vm658 = vweird.f32 %v652
    %vm659 = vmor %vm657, %vm658
    %v660 = vsel %vm659, %v652, %v656
    %v661 = vand.u32 2147483647, %v650
    %vm662 = vcmp.eq.f32.partialorder %v661, 8.507059e+37
    %v663 = vand.u32 %v650, 2147483648
    %v664 = vor.u32 1.1754944e-38, %v663
    %v665 = vsel %vm662, %v664, %v660
    %v666 = vmul.f32 1.0, %v665
    %v667 = vrcp.pop %v651
    %v668 = vmul.f32 %v651, %v667
    %v669 = vsub.f32 1.0, %v668
    %v670 = vmul.f32 %v667, %v669
    %v671 = vadd.f32 %v667, %v670
    %vm672 = vweird.f32 %v651
    %vm673 = vweird.f32 %v667
    %vm674 = vmor %vm672, %vm673
    %v675 = vsel %vm674, %v667, %v671
    %v676 = vand.u32 2147483647, %v651
    %vm677 = vcmp.eq.f32.partialorder %v676, 8.507059e+37
    %v678 = vand.u32 %v651, 2147483648
    %v679 = vor.u32 1.1754944e-38, %v678
    %v680 = vsel %vm677, %v679, %v675
    %v681 = vmul.f32 1.0, %v680
    %v682 = vtanh.pop %v643
    %v683 = vmul.f32 %v666, %v592
    %v684 = vmul.f32 %v666, %v682
    %686 = vrot.lane.b32.xlu0 %v684, 64
    %v687 = vpop.permute.xlu0 %686
    %v689 = vadd.f32 %v683, %v687
    %v690 = vtanh.pop %v689
    %v691 = vmul.f32 %v681, %v690
    %v692 = vld [vmem:[#allocation2 + $0x50] sm:$0xff]
    %v693 = vld [vmem:[#allocation2 + $0x58] sm:$0xff]
    %695 = vrot.lane.b32.xlu0 %v691, 64
    %v696 = vpop.permute.xlu0 %695
    %v697 = vsel %vm210, %v696, 0
    %699 = vmatpush.msra.mxu0 0.0
    %700 = vmatpush.msra.mxu0 0.0
    %701 = vmatpush.msra.mxu0 0.0
    %702 = vmatpush.msra.mxu0 0.0
    %703 = vmatpush.msra.mxu0 0.0
    %704 = vmatpush.msra.mxu0 0.0
    %705 = vmatpush.msra.mxu0 0.0
    %706 = vmatpush.msra.mxu0 0.0
    %707 = vmatpush.msra.mxu0 %v206
    %708 = vmatpush.msra.mxu0 %v204
    %709 = vmatpush.msra.mxu0 %v202
    %710 = vmatpush.msra.mxu0 %v200
    %711 = vmatpush.msra.mxu0 %v198
    %712 = vmatpush.msra.mxu0 %v196
    %713 = vmatpush.msra.mxu0 %v194
    %714 = vmatpush.msra.mxu0 %v192
    %715 = vmatmul.f32.gmra.mxu0 %v697
    %v716 = vpop.f32.mrf.mxu0
    %v717 = vadd.f32 0.0, %v716
    %718 = vdwg.mxu0
    %719 = vmatpush.msra.mxu0 0.0
    %720 = vmatpush.msra.mxu0 0.0
    %721 = vmatpush.msra.mxu0 0.0
    %722 = vmatpush.msra.mxu0 0.0
    %723 = vmatpush.msra.mxu0 0.0
    %724 = vmatpush.msra.mxu0 0.0
    %725 = vmatpush.msra.mxu0 0.0
    %726 = vmatpush.msra.mxu0 0.0
    %727 = vmatpush.msra.mxu0 %v207
    %728 = vmatpush.msra.mxu0 %v205
    %729 = vmatpush.msra.mxu0 %v203
    %730 = vmatpush.msra.mxu0 %v201
    %731 = vmatpush.msra.mxu0 %v199
    %732 = vmatpush.msra.mxu0 %v197
    %733 = vmatpush.msra.mxu0 %v195
    %734 = vmatpush.msra.mxu0 %v193
    %735 = vmatmul.f32.gmra.mxu0 %v697
    %v736 = vpop.f32.mrf.mxu0
    %v737 = vadd.f32 0.0, %v736
    %738 = vdwg.mxu0
    %v739 = vadd.f32 %v692, %v717
    %v740 = vadd.f32 %v693, %v737
    %v741 = vxor.u32 %v739, 2147483648
    %v742 = vxor.u32 %v740, 2147483648
    %v743 = vmul.f32 %v741, 1.442695
    %v744 = vpow.pop %v743
    %v745 = vmul.f32 %v742, 1.442695
    %v746 = vpow.pop %v745
    %v747 = vadd.f32 %v744, 1.0
    %v748 = vadd.f32 %v746, 1.0
    %v749 = vrcp.pop %v747
    %v750 = vmul.f32 %v747, %v749
    %v751 = vsub.f32 1.0, %v750
    %v752 = vmul.f32 %v749, %v751
    %v753 = vadd.f32 %v749, %v752
    %vm754 = vweird.f32 %v747
    %vm755 = vweird.f32 %v749
    %vm756 = vmor %vm754, %vm755
    %v757 = vsel %vm756, %v749, %v753
    %v758 = vand.u32 2147483647, %v747
    %vm759 = vcmp.eq.f32.partialorder %v758, 8.507059e+37
    %v760 = vand.u32 %v747, 2147483648
    %v761 = vor.u32 1.1754944e-38, %v760
    %v762 = vsel %vm759, %v761, %v757
    %v763 = vmul.f32 1.0, %v762
    %v764 = vrcp.pop %v748
    %v765 = vmul.f32 %v748, %v764
    %v766 = vsub.f32 1.0, %v765
    %v767 = vmul.f32 %v764, %v766
    %v768 = vadd.f32 %v764, %v767
    %vm769 = vweird.f32 %v748
    %vm770 = vweird.f32 %v764
    %vm771 = vmor %vm769, %vm770
    %v772 = vsel %vm771, %v764, %v768
    %v773 = vand.u32 2147483647, %v748
    %vm774 = vcmp.eq.f32.partialorder %v773, 8.507059e+37
    %v775 = vand.u32 %v748, 2147483648
    %v776 = vor.u32 1.1754944e-38, %v775
    %v777 = vsel %vm774, %v776, %v772
    %v778 = vmul.f32 1.0, %v777
    %v779 = vtanh.pop %v740
    %v780 = vmul.f32 %v763, %v689
    %v781 = vmul.f32 %v763, %v779
    %783 = vrot.lane.b32.xlu0 %v781, 64
    %v784 = vpop.permute.xlu0 %783
    %v786 = vadd.f32 %v780, %v784
    %v787 = vtanh.pop %v786
    %v788 = vmul.f32 %v778, %v787
    %v789 = vld [vmem:[#allocation2 + $0x60] sm:$0xff]
    %v790 = vld [vmem:[#allocation2 + $0x68] sm:$0xff]
    %792 = vrot.lane.b32.xlu0 %v788, 64
    %v793 = vpop.permute.xlu0 %792
    %v794 = vsel %vm210, %v793, 0
    %796 = vmatpush.msra.mxu0 0.0
    %797 = vmatpush.msra.mxu0 0.0
    %798 = vmatpush.msra.mxu0 0.0
    %799 = vmatpush.msra.mxu0 0.0
    %800 = vmatpush.msra.mxu0 0.0
    %801 = vmatpush.msra.mxu0 0.0
    %802 = vmatpush.msra.mxu0 0.0
    %803 = vmatpush.msra.mxu0 0.0
    %804 = vmatpush.msra.mxu0 %v206
    %805 = vmatpush.msra.mxu0 %v204
    %806 = vmatpush.msra.mxu0 %v202
    %807 = vmatpush.msra.mxu0 %v200
    %808 = vmatpush.msra.mxu0 %v198
    %809 = vmatpush.msra.mxu0 %v196
    %810 = vmatpush.msra.mxu0 %v194
    %811 = vmatpush.msra.mxu0 %v192
    %812 = vmatmul.f32.gmra.mxu0 %v794
    %v813 = vpop.f32.mrf.mxu0
    %v814 = vadd.f32 0.0, %v813
    %815 = vdwg.mxu0
    %816 = vmatpush.msra.mxu0 0.0
    %817 = vmatpush.msra.mxu0 0.0
    %818 = vmatpush.msra.mxu0 0.0
    %819 = vmatpush.msra.mxu0 0.0
    %820 = vmatpush.msra.mxu0 0.0
    %821 = vmatpush.msra.mxu0 0.0
    %822 = vmatpush.msra.mxu0 0.0
    %823 = vmatpush.msra.mxu0 0.0
    %824 = vmatpush.msra.mxu0 %v207
    %825 = vmatpush.msra.mxu0 %v205
    %826 = vmatpush.msra.mxu0 %v203
    %827 = vmatpush.msra.mxu0 %v201
    %828 = vmatpush.msra.mxu0 %v199
    %829 = vmatpush.msra.mxu0 %v197
    %830 = vmatpush.msra.mxu0 %v195
    %831 = vmatpush.msra.mxu0 %v193
    %832 = vmatmul.f32.gmra.mxu0 %v794
    %v833 = vpop.f32.mrf.mxu0
    %v834 = vadd.f32 0.0, %v833
    %835 = vdwg.mxu0
    %v836 = vadd.f32 %v789, %v814
    %v837 = vadd.f32 %v790, %v834
    %v838 = vxor.u32 %v836, 2147483648
    %v839 = vxor.u32 %v837, 2147483648
    %v840 = vmul.f32 %v838, 1.442695
    %v841 = vpow.pop %v840
    %v842 = vmul.f32 %v839, 1.442695
    %v843 = vpow.pop %v842
    %v844 = vadd.f32 %v841, 1.0
    %v845 = vadd.f32 %v843, 1.0
    %v846 = vrcp.pop %v844
    %v847 = vmul.f32 %v844, %v846
    %v848 = vsub.f32 1.0, %v847
    %v849 = vmul.f32 %v846, %v848
    %v850 = vadd.f32 %v846, %v849
    %vm851 = vweird.f32 %v844
    %vm852 = vweird.f32 %v846
    %vm853 = vmor %vm851, %vm852
    %v854 = vsel %vm853, %v846, %v850
    %v855 = vand.u32 2147483647, %v844
    %vm856 = vcmp.eq.f32.partialorder %v855, 8.507059e+37
    %v857 = vand.u32 %v844, 2147483648
    %v858 = vor.u32 1.1754944e-38, %v857
    %v859 = vsel %vm856, %v858, %v854
    %v860 = vmul.f32 1.0, %v859
    %v861 = vrcp.pop %v845
    %v862 = vmul.f32 %v845, %v861
    %v863 = vsub.f32 1.0, %v862
    %v864 = vmul.f32 %v861, %v863
    %v865 = vadd.f32 %v861, %v864
    %vm866 = vweird.f32 %v845
    %vm867 = vweird.f32 %v861
    %vm868 = vmor %vm866, %vm867
    %v869 = vsel %vm868, %v861, %v865
    %v870 = vand.u32 2147483647, %v845
    %vm871 = vcmp.eq.f32.partialorder %v870, 8.507059e+37
    %v872 = vand.u32 %v845, 2147483648
    %v873 = vor.u32 1.1754944e-38, %v872
    %v874 = vsel %vm871, %v873, %v869
    %v875 = vmul.f32 1.0, %v874
    %v876 = vtanh.pop %v837
    %v877 = vmul.f32 %v860, %v786
    %v878 = vmul.f32 %v860, %v876
    %880 = vrot.lane.b32.xlu0 %v878, 64
    %v881 = vpop.permute.xlu0 %880
    %v883 = vadd.f32 %v877, %v881
    %v884 = vtanh.pop %v883
    %v885 = vmul.f32 %v875, %v884
    %v886 = vld [vmem:[#allocation2 + $0x70] sm:$0xff]
    %v887 = vld [vmem:[#allocation2 + $0x78] sm:$0xff]
    %889 = vrot.lane.b32.xlu0 %v885, 64
    %v890 = vpop.permute.xlu0 %889
    %v891 = vsel %vm210, %v890, 0
    %893 = vmatpush.msra.mxu0 0.0
    %894 = vmatpush.msra.mxu0 0.0
    %895 = vmatpush.msra.mxu0 0.0
    %896 = vmatpush.msra.mxu0 0.0
    %897 = vmatpush.msra.mxu0 0.0
    %898 = vmatpush.msra.mxu0 0.0
    %899 = vmatpush.msra.mxu0 0.0
    %900 = vmatpush.msra.mxu0 0.0
    %901 = vmatpush.msra.mxu0 %v206
    %902 = vmatpush.msra.mxu0 %v204
    %903 = vmatpush.msra.mxu0 %v202
    %904 = vmatpush.msra.mxu0 %v200
    %905 = vmatpush.msra.mxu0 %v198
    %906 = vmatpush.msra.mxu0 %v196
    %907 = vmatpush.msra.mxu0 %v194
    %908 = vmatpush.msra.mxu0 %v192
    %909 = vmatmul.f32.gmra.mxu0 %v891
    %v910 = vpop.f32.mrf.mxu0
    %v911 = vadd.f32 0.0, %v910
    %912 = vdwg.mxu0
    %913 = vmatpush.msra.mxu0 0.0
    %914 = vmatpush.msra.mxu0 0.0
    %915 = vmatpush.msra.mxu0 0.0
    %916 = vmatpush.msra.mxu0 0.0
    %917 = vmatpush.msra.mxu0 0.0
    %918 = vmatpush.msra.mxu0 0.0
    %919 = vmatpush.msra.mxu0 0.0
    %920 = vmatpush.msra.mxu0 0.0
    %921 = vmatpush.msra.mxu0 %v207
    %922 = vmatpush.msra.mxu0 %v205
    %923 = vmatpush.msra.mxu0 %v203
    %924 = vmatpush.msra.mxu0 %v201
    %925 = vmatpush.msra.mxu0 %v199
    %926 = vmatpush.msra.mxu0 %v197
    %927 = vmatpush.msra.mxu0 %v195
    %928 = vmatpush.msra.mxu0 %v193
    %929 = vmatmul.f32.gmra.mxu0 %v891
    %v930 = vpop.f32.mrf.mxu0
    %v931 = vadd.f32 0.0, %v930
    %932 = vdwg.mxu0
    %v933 = vadd.f32 %v886, %v911
    %v934 = vadd.f32 %v887, %v931
    %v935 = vxor.u32 %v933, 2147483648
    %v936 = vxor.u32 %v934, 2147483648
    %v937 = vmul.f32 %v935, 1.442695
    %v938 = vpow.pop %v937
    %v939 = vmul.f32 %v936, 1.442695
    %v940 = vpow.pop %v939
    %v941 = vadd.f32 %v938, 1.0
    %v942 = vadd.f32 %v940, 1.0
    %v943 = vrcp.pop %v941
    %v944 = vmul.f32 %v941, %v943
    %v945 = vsub.f32 1.0, %v944
    %v946 = vmul.f32 %v943, %v945
    %v947 = vadd.f32 %v943, %v946
    %vm948 = vweird.f32 %v941
    %vm949 = vweird.f32 %v943
    %vm950 = vmor %vm948, %vm949
    %v951 = vsel %vm950, %v943, %v947
    %v952 = vand.u32 2147483647, %v941
    %vm953 = vcmp.eq.f32.partialorder %v952, 8.507059e+37
    %v954 = vand.u32 %v941, 2147483648
    %v955 = vor.u32 1.1754944e-38, %v954
    %v956 = vsel %vm953, %v955, %v951
    %v957 = vmul.f32 1.0, %v956
    %v958 = vrcp.pop %v942
    %v959 = vmul.f32 %v942, %v958
    %v960 = vsub.f32 1.0, %v959
    %v961 = vmul.f32 %v958, %v960
    %v962 = vadd.f32 %v958, %v961
    %vm963 = vweird.f32 %v942
    %vm964 = vweird.f32 %v958
    %vm965 = vmor %vm963, %vm964
    %v966 = vsel %vm965, %v958, %v962
    %v967 = vand.u32 2147483647, %v942
    %vm968 = vcmp.eq.f32.partialorder %v967, 8.507059e+37
    %v969 = vand.u32 %v942, 2147483648
    %v970 = vor.u32 1.1754944e-38, %v969
    %v971 = vsel %vm968, %v970, %v966
    %v972 = vmul.f32 1.0, %v971
    %v973 = vtanh.pop %v934
    %v974 = vmul.f32 %v957, %v883
    %v975 = vmul.f32 %v957, %v973
    %977 = vrot.lane.b32.xlu0 %v975, 64
    %v978 = vpop.permute.xlu0 %977
    %v980 = vadd.f32 %v974, %v978
    %v981 = vtanh.pop %v980
    %v982 = vmul.f32 %v972, %v981
    %v983 = vld [vmem:[%s4] sm:$0xff]
    %v984 = vld [vmem:[%s4 + $0x8] sm:$0xff]
    %v985 = vld [vmem:[%s4 + $0x10] sm:$0xff]
    %v986 = vld [vmem:[%s4 + $0x18] sm:$0xff]
    %v987 = vld [vmem:[%s4 + $0x20] sm:$0xff]
    %v988 = vld [vmem:[%s4 + $0x28] sm:$0xff]
    %v989 = vld [vmem:[%s4 + $0x30] sm:$0xff]
    %v990 = vld [vmem:[%s4 + $0x38] sm:$0xff]
    %v991 = vld [vmem:[%s5] sm:$0x1]
    %v993 = vperm.slane %v991, 0
    %996 = vrot.lane.b32.xlu0 %v982, 64
    %v997 = vpop.permute.xlu0 %996
    %v998 = vsel %vm210, %v997, 0
    %1000 = vmatpush.msra.mxu0 0.0
    %1001 = vmatpush.msra.mxu0 0.0
    %1002 = vmatpush.msra.mxu0 0.0
    %1003 = vmatpush.msra.mxu0 0.0
    %1004 = vmatpush.msra.mxu0 0.0
    %1005 = vmatpush.msra.mxu0 0.0
    %1006 = vmatpush.msra.mxu0 0.0
    %1007 = vmatpush.msra.mxu0 0.0
    %1008 = vmatpush.msra.mxu0 %v990
    %1009 = vmatpush.msra.mxu0 %v989
    %1010 = vmatpush.msra.mxu0 %v988
    %1011 = vmatpush.msra.mxu0 %v987
    %1012 = vmatpush.msra.mxu0 %v986
    %1013 = vmatpush.msra.mxu0 %v985
    %1014 = vmatpush.msra.mxu0 %v984
    %1015 = vmatpush.msra.mxu0 %v983
    %1016 = vmatmul.f32.gmra.mxu0 %v998
    %v1017 = vpop.f32.mrf.mxu0
    %v1018 = vadd.f32 %v993, %v1017
    %1019 = vdwg.mxu0
    %vm1020 = vcmask 80896
    %1021 = vst.msk [vmem:[#allocation6] sm:$0xff] %vm1020, %v1018
    // Predicated region
    $region30: #{tpu_custom_call.1} parent=1 // pred_check
      _
    $region31: #{tpu_custom_call.1} parent=1 // pred_check_branch
      %1023 = sbr.rel (0) target = $region33
    $region32: #{tpu_custom_call.1} parent=1 // pred_region
      %1025 = vsyncadd [#allocation5], 0
      %s1027 = sshll.u32 [#allocation6], 4
      %s1028 = int_to_ptr.vmem [resolvable:$true] %s1027
      %s1029 = sshll.u32 %s6, 4
      %s1030 = int_to_ptr.hbm [resolvable:$true] %s1029
      %1032 = dma.vmem_to_hbm [thread:$0]  %s1028, 128, %s1030, [#allocation5]
    $region33: #{tpu_custom_call.1} parent=1 // pred_fallthru
      _
    // Predicated region
    $region34: #{tpu_custom_call.1} parent=1 // pred_check
      _
    $region35: #{tpu_custom_call.1} parent=1 // pred_check_branch
      %1034 = sbr.rel (0) target = $region37
    $region36: #{tpu_custom_call.1} parent=1 // pred_region
      %1036 = dma.done [#allocation5], 128
    $region37: #{tpu_custom_call.1} parent=1 // pred_fallthru
      _
    %1037 = vsyncpa [#allocation4], 1
    %1038 = vsyncpa [#allocation5], 1

</llo_original>
